<compile_context>
chip_gen: v7x
topology: tpu7x:2x2x1
jax: 0.10.0
libtpu: 0.0.40
codegen_flags: <defaults>
</compile_context>

<pallas_src>
import math

import jax
import jax.numpy as jnp
from jax.experimental import pallas as pl
from jax.experimental.pallas import tpu as pltpu


def mlpfreq_kernel(mf_ref, x_ref, w1_ref, b1_ref, w2a_ref, w2b_ref, b2_ref,
                   w3_ref, b3_ref, o_ref):
    cdt = w1_ref.dtype                     # streaming/compute dtype (bfloat16)
    dn = (((1,), (1,)), ((), ()))          # contract last dim of both operands (A @ B^T)

    mf = mf_ref[...].astype(cdt)           # (tn, seq_len), in-register cast (no HBM pass)
    x = x_ref[...].astype(cdt)             # (tn, seq_len)

    # h = relu(mf @ W1^T + b1)                                    (tn, 64), f32 acc
    h = jax.lax.dot_general(mf, w1_ref[...], dn, preferred_element_type=jnp.float32)
    h = jnp.maximum(h + b1_ref[...], 0.0)

    # u = relu(concat(h, x) @ W2^T + b2) == relu(h@W2a^T + x@W2b^T + b2)  (tn, 128)
    u = (jax.lax.dot_general(h.astype(cdt), w2a_ref[...], dn,
                             preferred_element_type=jnp.float32)
         + jax.lax.dot_general(x, w2b_ref[...], dn,
                               preferred_element_type=jnp.float32)
         + b2_ref[...])
    u = jnp.maximum(u, 0.0)

    # out = u @ W3^T + b3                                         (tn, pred_len), f32
    out = jax.lax.dot_general(u.astype(cdt), w3_ref[...], dn,
                              preferred_element_type=jnp.float32)
    o_ref[...] = (out + b3_ref[...]).astype(o_ref.dtype)


def _choose_tn(n, tn_max=1024):
    """Row-tile (sublane axis) size.  Capped at 1024 (tile sweeps: <1% gain beyond
    1024 while per-step VMEM doubles).  When tiling is needed the step count is
    rounded up to an even number so v7x's two TensorCores split the single
    'parallel' grid axis evenly (irrelevant on single-TC v5e/v6e)."""
    if n <= tn_max:
        return n
    steps = pl.cdiv(n, tn_max)
    if steps % 2:
        steps += 1
    tn = pl.cdiv(n, steps)
    return max(8, ((tn + 7) // 8) * 8)


def _vmem_limit_bytes(tn, seq_len, pred_len):
    """Explicit scoped-VMEM budget: double-buffered f32 input/output tiles plus the
    f32 h/u intermediates and bf16 staging, weights and headroom.  Clamped to stay
    under v7x's 64 MiB physical VMEM while exceeding v5e's 16 MiB default scope."""
    acts = 2 * 2 * tn * seq_len * 4          # two f32 input tiles, double-buffered
    outs = 2 * tn * pred_len * 4             # f32 output tile, double-buffered
    inter = tn * (64 + 128) * 4 * 2          # h/u f32 accumulators + bf16 staging
    budget = acts + outs + inter + (8 << 20)  # weights/biases + headroom
    return int(min(max(budget, 32 << 20), 56 << 20))


def mlpfreq_forward(main_freq, x, params, *, tn=None):
    """main_freq, x: (..., seq_len) float32. Returns (..., pred_len) float32."""
    w1, b1, w2a, w2b, b2, w3, b3 = params
    seq_len = main_freq.shape[-1]
    pred_len = w3.shape[0]
    lead = main_freq.shape[:-1]
    N = int(math.prod(lead)) if lead else 1
    if tn is None:
        tn = _choose_tn(N)

    # Free view-reshapes only -- no transpose, no cast, no extra HBM pass.
    mf2 = main_freq.reshape(N, seq_len)
    x2 = x.reshape(N, seq_len)

    grid = (max(1, pl.cdiv(N, tn)),)
    row_spec = lambda cols: pl.BlockSpec((tn, cols), lambda i: (i, 0))
    # Grid-invariant weight/bias tiles (index_map always (0,0)); kept default-buffered
    # for robustness -- they are KB-scale so the extra buffer is negligible VMEM.
    full = lambda a: pl.BlockSpec(a.shape, lambda i: (0,) * a.ndim)

    flops = 2 * N * (seq_len * 64 + (64 + seq_len) * 128 + 128 * pred_len)
    weight_bytes = sum(int(a.size) * a.dtype.itemsize
                       for a in (w1, b1, w2a, w2b, b2, w3, b3))
    bytes_accessed = 2 * N * seq_len * 4 + N * pred_len * 4 + weight_bytes

    out = pl.pallas_call(
        mlpfreq_kernel,
        out_shape=jax.ShapeDtypeStruct((N, pred_len), jnp.float32),
        grid_spec=pltpu.PrefetchScalarGridSpec(
            num_scalar_prefetch=0,
            grid=grid,
            in_specs=[
                row_spec(seq_len),                 # main_freq rows (N, seq_len)
                row_spec(seq_len),                 # x rows         (N, seq_len)
                full(w1), full(b1),                # Linear(seq_len, 64)
                full(w2a), full(w2b), full(b2),    # Linear(64+seq_len, 128), split
                full(w3), full(b3),                # Linear(128, pred_len)
            ],
            out_specs=row_spec(pred_len),          # (N, pred_len), no output transpose
        ),
        compiler_params=pltpu.CompilerParams(
            dimension_semantics=("parallel",),
            vmem_limit_bytes=_vmem_limit_bytes(tn, seq_len, pred_len)),
        cost_estimate=pl.CostEstimate(flops=flops, transcendentals=0,
                                      bytes_accessed=bytes_accessed),
    )(mf2, x2, w1, b1, w2a, w2b, b2, w3, b3)

    return out.reshape(*lead, pred_len)


def init_params(key, seq_len, pred_len, compute_dtype=jnp.bfloat16):
    """Deterministic init matching nn.Linear's U(-1/sqrt(fan_in), 1/sqrt(fan_in)).
    Weights kept in PyTorch (out, in) layout and pre-cast ONCE to the compute dtype;
    biases stored as float32 (1, out) rows."""
    def linear(k, fan_in, fan_out):
        kw, kb = jax.random.split(k)
        bound = 1.0 / math.sqrt(fan_in)
        w = jax.random.uniform(kw, (fan_out, fan_in), jnp.float32, -bound, bound)
        b = jax.random.uniform(kb, (1, fan_out), jnp.float32, -bound, bound)
        return w.astype(compute_dtype), b

    k1, k2, k3 = jax.random.split(key, 3)
    w1, b1 = linear(k1, seq_len, 64)                 # model_freq Linear
    w2, b2 = linear(k2, 64 + seq_len, 128)           # model_all Linear 1
    w3, b3 = linear(k3, 128, pred_len)               # model_all Linear 2
    # Split W2 so concat([h, x], dim=-1) is never materialized: first 64 input
    # columns act on h (model_freq output comes first in the torch concat), the
    # remaining seq_len columns act on x.
    w2a, w2b = w2[:, :64], w2[:, 64:]
    return (w1, b1, w2a, w2b, b2, w3, b3)


def reference(main_freq, x, params):
    """Pure-JAX reference with the original torch semantics (explicit concat order),
    mirroring the kernel's bf16 streaming / f32 accumulation."""
    w1, b1, w2a, w2b, b2, w3, b3 = params
    cdt = w1.dtype
    dn = (((1,), (1,)), ((), ()))
    lead = main_freq.shape[:-1]
    mf = main_freq.reshape(-1, main_freq.shape[-1]).astype(cdt)
    xc = x.reshape(-1, x.shape[-1]).astype(cdt)
    h = jnp.maximum(
        jax.lax.dot_general(mf, w1, dn, preferred_element_type=jnp.float32) + b1, 0.0)
    u = jnp.maximum(
        jax.lax.dot_general(h.astype(cdt), w2a, dn, preferred_element_type=jnp.float32)
        + jax.lax.dot_general(xc, w2b, dn, preferred_element_type=jnp.float32)
        + b2, 0.0)
    out = jax.lax.dot_general(u.astype(cdt), w3, dn,
                              preferred_element_type=jnp.float32) + b3
    return out.reshape(*lead, w3.shape[0])


if __name__ == "__main__":
    seq_len, pred_len, enc_in, batch = 16, 8, 4, 2

    key = jax.random.PRNGKey(0)
    kp, kf, kx = jax.random.split(key, 3)
    params = init_params(kp, seq_len, pred_len)

    # (batch, channels, seq_len): the torch module applies its Linears to the last dim.
    main_freq = jax.random.normal(kf, (batch, enc_in, seq_len), jnp.float32)
    x = jax.random.normal(kx, (batch, enc_in, seq_len), jnp.float32)

    out = mlpfreq_forward(main_freq, x, params)
    out = jax.block_until_ready(out)

    ref = reference(main_freq, x, params)
    assert out.shape == (batch, enc_in, pred_len)
    # bf16 streaming of inputs/weights is a deliberate precision change vs the f32
    # torch module; 5e-3 tolerance documents that.
    assert jnp.allclose(out, ref, atol=5e-3, rtol=5e-3), float(jnp.max(jnp.abs(out - ref)))
    print("KERNEL_OK")
</pallas_src>

<mosaic_0001>
module attributes {stable_mosaic.version = 11 : i64} {
  func.func @mlpfreq_kernel(%arg0: i32, %arg1: memref<8x16xf32, #tpu.memory_space<vmem>>, %arg2: memref<8x16xf32, #tpu.memory_space<vmem>>, %arg3: memref<64x16xbf16, #tpu.memory_space<vmem>>, %arg4: memref<1x64xf32, #tpu.memory_space<vmem>>, %arg5: memref<128x64xbf16, #tpu.memory_space<vmem>>, %arg6: memref<128x16xbf16, #tpu.memory_space<vmem>>, %arg7: memref<1x128xf32, #tpu.memory_space<vmem>>, %arg8: memref<8x128xbf16, #tpu.memory_space<vmem>>, %arg9: memref<1x8xf32, #tpu.memory_space<vmem>>, %arg10: memref<8x8xf32, #tpu.memory_space<vmem>>) attributes {dimension_semantics = [#tpu.dimension_semantics<parallel>], iteration_bounds = array<i64: 1>, scalar_prefetch = 0 : i64, scratch_operands = 0 : i64, tpu.core_type = #tpu.core_type<tc>, window_params = [{transform_indices = @transform_0, window_bounds = array<i64: 8, 16>}, {transform_indices = @transform_1, window_bounds = array<i64: 8, 16>}, {pipeline_mode = #tpu.pipeline_mode<synchronous>, transform_indices = @transform_2, window_bounds = array<i64: 64, 16>}, {pipeline_mode = #tpu.pipeline_mode<synchronous>, transform_indices = @transform_3, window_bounds = array<i64: 1, 64>}, {pipeline_mode = #tpu.pipeline_mode<synchronous>, transform_indices = @transform_4, window_bounds = array<i64: 128, 64>}, {pipeline_mode = #tpu.pipeline_mode<synchronous>, transform_indices = @transform_5, window_bounds = array<i64: 128, 16>}, {pipeline_mode = #tpu.pipeline_mode<synchronous>, transform_indices = @transform_6, window_bounds = array<i64: 1, 128>}, {pipeline_mode = #tpu.pipeline_mode<synchronous>, transform_indices = @transform_7, window_bounds = array<i64: 8, 128>}, {pipeline_mode = #tpu.pipeline_mode<synchronous>, transform_indices = @transform_8, window_bounds = array<i64: 1, 8>}, {transform_indices = @transform_9, window_bounds = array<i64: 8, 8>}]} {
    %c0 = arith.constant 0 : index
    %c0_0 = arith.constant 0 : index
    %0 = vector.load %arg1[%c0, %c0_0] : memref<8x16xf32, #tpu.memory_space<vmem>>, vector<8x16xf32>
    %1 = arith.truncf %0 : vector<8x16xf32> to vector<8x16xbf16>
    %c0_1 = arith.constant 0 : index
    %c0_2 = arith.constant 0 : index
    %2 = vector.load %arg2[%c0_1, %c0_2] : memref<8x16xf32, #tpu.memory_space<vmem>>, vector<8x16xf32>
    %3 = arith.truncf %2 : vector<8x16xf32> to vector<8x16xbf16>
    %c0_3 = arith.constant 0 : index
    %c0_4 = arith.constant 0 : index
    %4 = vector.load %arg3[%c0_3, %c0_4] : memref<64x16xbf16, #tpu.memory_space<vmem>>, vector<64x16xbf16>
    %cst = arith.constant dense<0.000000e+00> : vector<8x64xf32>
    %5 = tpu.matmul %1, %4, %cst {dimension_numbers = #tpu.dot_dimension_numbers<[1], [1], [0], [0], [0, 0, 1, 0], [], []>} : vector<8x16xbf16>, vector<64x16xbf16>, vector<8x64xf32> -> vector<8x64xf32>
    %c0_5 = arith.constant 0 : index
    %c0_6 = arith.constant 0 : index
    %6 = vector.load %arg4[%c0_5, %c0_6] : memref<1x64xf32, #tpu.memory_space<vmem>>, vector<1x64xf32>
    %7 = vector.broadcast %6 : vector<1x64xf32> to vector<8x64xf32>
    %8 = arith.addf %5, %7 : vector<8x64xf32>
    %cst_7 = arith.constant 0.000000e+00 : f32
    %9 = vector.broadcast %cst_7 : f32 to vector<8x64xf32>
    %10 = arith.maximumf %8, %9 : vector<8x64xf32>
    %11 = arith.truncf %10 : vector<8x64xf32> to vector<8x64xbf16>
    %c0_8 = arith.constant 0 : index
    %c0_9 = arith.constant 0 : index
    %12 = vector.load %arg5[%c0_8, %c0_9] : memref<128x64xbf16, #tpu.memory_space<vmem>>, vector<128x64xbf16>
    %cst_10 = arith.constant dense<0.000000e+00> : vector<8x128xf32>
    %13 = tpu.matmul %11, %12, %cst_10 {dimension_numbers = #tpu.dot_dimension_numbers<[1], [1], [0], [0], [0, 0, 1, 0], [], []>} : vector<8x64xbf16>, vector<128x64xbf16>, vector<8x128xf32> -> vector<8x128xf32>
    %c0_11 = arith.constant 0 : index
    %c0_12 = arith.constant 0 : index
    %14 = vector.load %arg6[%c0_11, %c0_12] : memref<128x16xbf16, #tpu.memory_space<vmem>>, vector<128x16xbf16>
    %cst_13 = arith.constant dense<0.000000e+00> : vector<8x128xf32>
    %15 = tpu.matmul %3, %14, %cst_13 {dimension_numbers = #tpu.dot_dimension_numbers<[1], [1], [0], [0], [0, 0, 1, 0], [], []>} : vector<8x16xbf16>, vector<128x16xbf16>, vector<8x128xf32> -> vector<8x128xf32>
    %16 = arith.addf %13, %15 : vector<8x128xf32>
    %c0_14 = arith.constant 0 : index
    %c0_15 = arith.constant 0 : index
    %17 = vector.load %arg7[%c0_14, %c0_15] : memref<1x128xf32, #tpu.memory_space<vmem>>, vector<1x128xf32>
    %18 = vector.broadcast %17 : vector<1x128xf32> to vector<8x128xf32>
    %19 = arith.addf %16, %18 : vector<8x128xf32>
    %cst_16 = arith.constant 0.000000e+00 : f32
    %20 = vector.broadcast %cst_16 : f32 to vector<8x128xf32>
    %21 = arith.maximumf %19, %20 : vector<8x128xf32>
    %22 = arith.truncf %21 : vector<8x128xf32> to vector<8x128xbf16>
    %c0_17 = arith.constant 0 : index
    %c0_18 = arith.constant 0 : index
    %23 = vector.load %arg8[%c0_17, %c0_18] : memref<8x128xbf16, #tpu.memory_space<vmem>>, vector<8x128xbf16>
    %cst_19 = arith.constant dense<0.000000e+00> : vector<8x8xf32>
    %24 = tpu.matmul %22, %23, %cst_19 {dimension_numbers = #tpu.dot_dimension_numbers<[1], [1], [0], [0], [0, 0, 1, 0], [], []>} : vector<8x128xbf16>, vector<8x128xbf16>, vector<8x8xf32> -> vector<8x8xf32>
    %c0_20 = arith.constant 0 : index
    %c0_21 = arith.constant 0 : index
    %25 = vector.load %arg9[%c0_20, %c0_21] : memref<1x8xf32, #tpu.memory_space<vmem>>, vector<1x8xf32>
    %26 = vector.broadcast %25 : vector<1x8xf32> to vector<8x8xf32>
    %27 = arith.addf %24, %26 : vector<8x8xf32>
    %c0_22 = arith.constant 0 : index
    %c0_23 = arith.constant 0 : index
    %28 = vector.load %arg10[%c0_22, %c0_23] : memref<8x8xf32, #tpu.memory_space<vmem>>, vector<8x8xf32>
    tpu.vector_store %arg10[%c0_22, %c0_23], %27 {strides = array<i32>} : memref<8x8xf32, #tpu.memory_space<vmem>>, vector<8x8xf32>,
    return
  }
  func.func @transform_0(%arg0: i32) -> (i32, i32) {
    %c0_i32 = arith.constant 0 : i32
    %c0_i32_0 = arith.constant 0 : i32
    return %arg0, %c0_i32 : i32, i32
  }
  func.func @transform_1(%arg0: i32) -> (i32, i32) {
    %c0_i32 = arith.constant 0 : i32
    %c0_i32_0 = arith.constant 0 : i32
    return %arg0, %c0_i32 : i32, i32
  }
  func.func @transform_2(%arg0: i32) -> (i32, i32) {
    %c0_i32 = arith.constant 0 : i32
    %c0_i32_0 = arith.constant 0 : i32
    %c0_i32_1 = arith.constant 0 : i32
    return %c0_i32, %c0_i32_0 : i32, i32
  }
  func.func @transform_3(%arg0: i32) -> (i32, i32) {
    %c0_i32 = arith.constant 0 : i32
    %c0_i32_0 = arith.constant 0 : i32
    %c0_i32_1 = arith.constant 0 : i32
    return %c0_i32, %c0_i32_0 : i32, i32
  }
  func.func @transform_4(%arg0: i32) -> (i32, i32) {
    %c0_i32 = arith.constant 0 : i32
    %c0_i32_0 = arith.constant 0 : i32
    %c0_i32_1 = arith.constant 0 : i32
    return %c0_i32, %c0_i32_0 : i32, i32
  }
  func.func @transform_5(%arg0: i32) -> (i32, i32) {
    %c0_i32 = arith.constant 0 : i32
    %c0_i32_0 = arith.constant 0 : i32
    %c0_i32_1 = arith.constant 0 : i32
    return %c0_i32, %c0_i32_0 : i32, i32
  }
  func.func @transform_6(%arg0: i32) -> (i32, i32) {
    %c0_i32 = arith.constant 0 : i32
    %c0_i32_0 = arith.constant 0 : i32
    %c0_i32_1 = arith.constant 0 : i32
    return %c0_i32, %c0_i32_0 : i32, i32
  }
  func.func @transform_7(%arg0: i32) -> (i32, i32) {
    %c0_i32 = arith.constant 0 : i32
    %c0_i32_0 = arith.constant 0 : i32
    %c0_i32_1 = arith.constant 0 : i32
    return %c0_i32, %c0_i32_0 : i32, i32
  }
  func.func @transform_8(%arg0: i32) -> (i32, i32) {
    %c0_i32 = arith.constant 0 : i32
    %c0_i32_0 = arith.constant 0 : i32
    %c0_i32_1 = arith.constant 0 : i32
    return %c0_i32, %c0_i32_0 : i32, i32
  }
  func.func @transform_9(%arg0: i32) -> (i32, i32) {
    %c0_i32 = arith.constant 0 : i32
    %c0_i32_0 = arith.constant 0 : i32
    return %arg0, %c0_i32 : i32, i32
  }
}

</mosaic_0001>

<llo_original>
// kernel: tpu_custom_call.1
$region0: #{tpu_custom_call.1}
  #allocation0 [shape = 'u32[]', space=smem, size = 0x4, offset = 0x4, fixed_abs, tag = 'smem constant byte address 0x4 - core index']
  #allocation1 [shape = 'u32[144,128]{1,0:T(1,128)}', space=vmem, size = 0x12000, scoped, tag = 'internal scratch']
  %s0 = inlined_call_operand.vmem [shape: f32[8,16], index: 0, kind: input, shape index: {}]
  %s1 = inlined_call_operand.vmem [shape: f32[8,16], index: 1, kind: input, shape index: {}]
  %s2 = inlined_call_operand.vmem [shape: bf16[64,16], index: 2, kind: input, shape index: {}]
  %s3 = inlined_call_operand.vmem [shape: f32[1,64], index: 3, kind: input, shape index: {}]
  %s4 = inlined_call_operand.vmem [shape: bf16[128,64], index: 4, kind: input, shape index: {}]
  %s5 = inlined_call_operand.vmem [shape: bf16[128,16], index: 5, kind: input, shape index: {}]
  %s6 = inlined_call_operand.vmem [shape: f32[1,128], index: 6, kind: input, shape index: {}]
  %s7 = inlined_call_operand.vmem [shape: bf16[8,128], index: 7, kind: input, shape index: {}]
  %s8 = inlined_call_operand.vmem [shape: f32[1,8], index: 8, kind: input, shape index: {}]
  %s9 = inlined_call_operand.hbm [shape: f32[8,8], index: 9, kind: output, shape index: {}]
  %s10 = sld [smem:[#allocation0]]
  $region46: #{tpu_custom_call.1} parent=0
    _
  %s12 = ssub.s32 1, %s10
  %s13 = scalar_select 0, %s12, %s10
  $region1: #{tpu_custom_call.1} parent=0
    #allocation2 [shape = 'u8[4096]{0}', space=vmem, size = 0x1000, scoped, tag = 'output window, operand 0, single buffered']
    #allocation3 [shape = 's32[1]{0}', space=sflag, size = 0x4, scoped, tag = 'scoped memory for tpu_custom_call.1']
    %14 = vsyncpa [#allocation3], 0
    // Predicated region
    $region2: #{tpu_custom_call.1} parent=1 // pred_check
      _
    $region3: #{tpu_custom_call.1} parent=1 // pred_check_branch
      %16 = sbr.rel (0) target = $region5
    $region4: #{tpu_custom_call.1} parent=1 // pred_region
      _
    $region5: #{tpu_custom_call.1} parent=1 // pred_fallthru
      _
    // Predicated region
    $region6: #{tpu_custom_call.1} parent=1 // pred_check
      _
    $region7: #{tpu_custom_call.1} parent=1 // pred_check_branch
      %18 = sbr.rel (0) target = $region9
    $region8: #{tpu_custom_call.1} parent=1 // pred_region
      _
    $region9: #{tpu_custom_call.1} parent=1 // pred_fallthru
      _
    // Predicated region
    $region10: #{tpu_custom_call.1} parent=1 // pred_check
      _
    $region11: #{tpu_custom_call.1} parent=1 // pred_check_branch
      %20 = sbr.rel (0) target = $region13
    $region12: #{tpu_custom_call.1} parent=1 // pred_region
      _
    $region13: #{tpu_custom_call.1} parent=1 // pred_fallthru
      _
    // Predicated region
    $region14: #{tpu_custom_call.1} parent=1 // pred_check
      _
    $region15: #{tpu_custom_call.1} parent=1 // pred_check_branch
      %22 = sbr.rel (0) target = $region17
    $region16: #{tpu_custom_call.1} parent=1 // pred_region
      _
    $region17: #{tpu_custom_call.1} parent=1 // pred_fallthru
      _
    // Predicated region
    $region18: #{tpu_custom_call.1} parent=1 // pred_check
      _
    $region19: #{tpu_custom_call.1} parent=1 // pred_check_branch
      %24 = sbr.rel (0) target = $region21
    $region20: #{tpu_custom_call.1} parent=1 // pred_region
      _
    $region21: #{tpu_custom_call.1} parent=1 // pred_fallthru
      _
    // Predicated region
    $region22: #{tpu_custom_call.1} parent=1 // pred_check
      _
    $region23: #{tpu_custom_call.1} parent=1 // pred_check_branch
      %26 = sbr.rel (0) target = $region25
    $region24: #{tpu_custom_call.1} parent=1 // pred_region
      _
    $region25: #{tpu_custom_call.1} parent=1 // pred_fallthru
      _
    // Predicated region
    $region26: #{tpu_custom_call.1} parent=1 // pred_check
      _
    $region27: #{tpu_custom_call.1} parent=1 // pred_check_branch
      %28 = sbr.rel (0) target = $region29
    $region28: #{tpu_custom_call.1} parent=1 // pred_region
      _
    $region29: #{tpu_custom_call.1} parent=1 // pred_fallthru
      _
    // Predicated region
    $region30: #{tpu_custom_call.1} parent=1 // pred_check
      _
    $region31: #{tpu_custom_call.1} parent=1 // pred_check_branch
      %30 = sbr.rel (0) target = $region33
    $region32: #{tpu_custom_call.1} parent=1 // pred_region
      _
    $region33: #{tpu_custom_call.1} parent=1 // pred_fallthru
      _
    // Predicated region
    $region34: #{tpu_custom_call.1} parent=1 // pred_check
      _
    $region35: #{tpu_custom_call.1} parent=1 // pred_check_branch
      %32 = sbr.rel (0) target = $region37
    $region36: #{tpu_custom_call.1} parent=1 // pred_region
      _
    $region37: #{tpu_custom_call.1} parent=1 // pred_fallthru
      _
    %v34 = vld [vmem:[%s0] sm:$0xff]
    %v35 = vpack.c.bf16 %v34, %v34
    %v36 = vld [vmem:[%s1] sm:$0xff]
    %v37 = vpack.c.bf16 %v36, %v36
    %v38 = vld [vmem:[%s2] sm:$0xf]
    %v39 = vld [vmem:[%s2 + $0x4] sm:$0xf]
    %v40 = vld [vmem:[%s2 + $0x8] sm:$0xf]
    %v41 = vld [vmem:[%s2 + $0xc] sm:$0xf]
    %v42 = vld [vmem:[%s2 + $0x10] sm:$0xf]
    %v43 = vld [vmem:[%s2 + $0x14] sm:$0xf]
    %v44 = vld [vmem:[%s2 + $0x18] sm:$0xf]
    %v45 = vld [vmem:[%s2 + $0x1c] sm:$0xf]
    %v46 = vld [vmem:[%s3] sm:$0x1]
    %v48 = vlaneseq
    %v49 = vshrl.u32 %v48, 7
    %v50 = vsub.s32 0, %v49
    %v51 = vrot.slane %v46, %v50
    %v61 = vunpack.c.l.b16 %v38
    %v62 = vunpack.c.l.b16 %v39
    %v63 = vunpack.c.l.b16 %v40
    %v64 = vunpack.c.l.b16 %v41
    %v65 = vunpack.c.l.b16 %v42
    %v66 = vunpack.c.l.b16 %v43
    %v67 = vunpack.c.l.b16 %v44
    %v68 = vunpack.c.l.b16 %v45
    %v69 = vpack.c.b16 %v62, %v61
    %v70 = vpack.c.b16 %v64, %v63
    %v71 = vpack.c.b16 %v66, %v65
    %v72 = vpack.c.b16 %v68, %v67
    %vm73 = vcmask 130048
    %v75 = vsel %vm73, %v35, 0
    %v78 = vsel %vm73, %v69, 0
    %v81 = vsel %vm73, %v70, 0
    %v84 = vsel %vm73, %v71, 0
    %v87 = vsel %vm73, %v72, 0
    %89 = vmatprep.subr.bf16.mxu0 0
    %90 = vmatpush1.bf16.xpose.msra.mxu0 %v78
    %91 = vmatprep.subr.bf16.mxu0 0
    %92 = vmatpush1.bf16.xpose.msra.mxu0 %v81
    %93 = vmatprep.subr.bf16.mxu0 0
    %94 = vmatpush1.bf16.xpose.msra.mxu0 %v84
    %95 = vmatprep.subr.bf16.mxu0 0
    %96 = vmatpush1.bf16.xpose.msra.mxu0 %v87
    %97 = vmatprep.subr.bf16.mxu0 0
    %98 = vmatpush1.bf16.xpose.msra.mxu0 0
    %99 = vmatprep.subr.bf16.mxu0 0
    %100 = vmatpush1.bf16.xpose.msra.mxu0 0
    %101 = vmatprep.subr.bf16.mxu0 0
    %102 = vmatpush1.bf16.xpose.msra.mxu0 0
    %103 = vmatprep.subr.bf16.mxu0 0
    %104 = vmatpush1.bf16.xpose.msra.mxu0 0
    %105 = vmatprep.subr.bf16.mxu0 0
    %106 = vmatpush1.bf16.xpose.msra.mxu0 0
    %107 = vmatprep.subr.bf16.mxu0 0
    %108 = vmatpush1.bf16.xpose.msra.mxu0 0
    %109 = vmatprep.subr.bf16.mxu0 0
    %110 = vmatpush1.bf16.xpose.msra.mxu0 0
    %111 = vmatprep.subr.bf16.mxu0 0
    %112 = vmatpush1.bf16.xpose.msra.mxu0 0
    %113 = vmatprep.subr.bf16.mxu0 0
    %114 = vmatpush1.bf16.xpose.msra.mxu0 0
    %115 = vmatprep.subr.bf16.mxu0 0
    %116 = vmatpush1.bf16.xpose.msra.mxu0 0
    %117 = vmatprep.subr.bf16.mxu0 0
    %118 = vmatpush1.bf16.xpose.msra.mxu0 0
    %119 = vmatprep.subr.bf16.mxu0 0
    %120 = vmatpush1.bf16.xpose.msra.mxu0 0
    %121 = vmatprep.mubr.bf16.mxu0 0
    %122 = vmatmul.mubr.bf16.gmra.mrb[0].mxu0 %v75
    %v123 = vpop.f32.mrb[0].mxu0
    %v124 = vadd.f32 %v51, %v123
    %v125 = vpop.f32.mrb[0].mxu0
    %v126 = vpop.f32.mrb[0].mxu0
    %v127 = vpop.f32.mrb[0].mxu0
    %128 = vdwg.mxu0
    %v129 = vmax.f32 %v124, 0.0
    %v130 = vpack.c.bf16 %v129, %v129
    %v131 = vld [vmem:[%s4] sm:$0xf]
    %v132 = vld [vmem:[%s4 + $0x4] sm:$0xf]
    %v133 = vld [vmem:[%s4 + $0x8] sm:$0xf]
    %v134 = vld [vmem:[%s4 + $0xc] sm:$0xf]
    %v135 = vld [vmem:[%s4 + $0x10] sm:$0xf]
    %v136 = vld [vmem:[%s4 + $0x14] sm:$0xf]
    %v137 = vld [vmem:[%s4 + $0x18] sm:$0xf]
    %v138 = vld [vmem:[%s4 + $0x1c] sm:$0xf]
    %v139 = vld [vmem:[%s4 + $0x20] sm:$0xf]
    %v140 = vld [vmem:[%s4 + $0x24] sm:$0xf]
    %v141 = vld [vmem:[%s4 + $0x28] sm:$0xf]
    %v142 = vld [vmem:[%s4 + $0x2c] sm:$0xf]
    %v143 = vld [vmem:[%s4 + $0x30] sm:$0xf]
    %v144 = vld [vmem:[%s4 + $0x34] sm:$0xf]
    %v145 = vld [vmem:[%s4 + $0x38] sm:$0xf]
    %v146 = vld [vmem:[%s4 + $0x3c] sm:$0xf]
    %v147 = vld [vmem:[%s5] sm:$0xf]
    %v148 = vld [vmem:[%s5 + $0x4] sm:$0xf]
    %v149 = vld [vmem:[%s5 + $0x8] sm:$0xf]
    %v150 = vld [vmem:[%s5 + $0xc] sm:$0xf]
    %v151 = vld [vmem:[%s5 + $0x10] sm:$0xf]
    %v152 = vld [vmem:[%s5 + $0x14] sm:$0xf]
    %v153 = vld [vmem:[%s5 + $0x18] sm:$0xf]
    %v154 = vld [vmem:[%s5 + $0x1c] sm:$0xf]
    %v155 = vld [vmem:[%s5 + $0x20] sm:$0xf]
    %v156 = vld [vmem:[%s5 + $0x24] sm:$0xf]
    %v157 = vld [vmem:[%s5 + $0x28] sm:$0xf]
    %v158 = vld [vmem:[%s5 + $0x2c] sm:$0xf]
    %v159 = vld [vmem:[%s5 + $0x30] sm:$0xf]
    %v160 = vld [vmem:[%s5 + $0x34] sm:$0xf]
    %v161 = vld [vmem:[%s5 + $0x38] sm:$0xf]
    %v162 = vld [vmem:[%s5 + $0x3c] sm:$0xf]
    %v179 = vunpack.c.l.b16 %v147
    %v180 = vunpack.c.l.b16 %v148
    %v181 = vunpack.c.l.b16 %v149
    %v182 = vunpack.c.l.b16 %v150
    %v183 = vunpack.c.l.b16 %v151
    %v184 = vunpack.c.l.b16 %v152
    %v185 = vunpack.c.l.b16 %v153
    %v186 = vunpack.c.l.b16 %v154
    %v187 = vunpack.c.l.b16 %v155
    %v188 = vunpack.c.l.b16 %v156
    %v189 = vunpack.c.l.b16 %v157
    %v190 = vunpack.c.l.b16 %v158
    %v191 = vunpack.c.l.b16 %v159
    %v192 = vunpack.c.l.b16 %v160
    %v193 = vunpack.c.l.b16 %v161
    %v194 = vunpack.c.l.b16 %v162
    %v195 = vpack.c.b16 %v180, %v179
    %v196 = vpack.c.b16 %v182, %v181
    %v197 = vpack.c.b16 %v184, %v183
    %v198 = vpack.c.b16 %v186, %v185
    %v199 = vpack.c.b16 %v188, %v187
    %v200 = vpack.c.b16 %v190, %v189
    %v201 = vpack.c.b16 %v192, %v191
    %v202 = vpack.c.b16 %v194, %v193
    %v204 = vsel %vm73, %v37, 0
    %v207 = vsel %vm73, %v195, 0
    %v210 = vsel %vm73, %v196, 0
    %v213 = vsel %vm73, %v197, 0
    %v216 = vsel %vm73, %v198, 0
    %v219 = vsel %vm73, %v199, 0
    %v222 = vsel %vm73, %v200, 0
    %v225 = vsel %vm73, %v201, 0
    %v228 = vsel %vm73, %v202, 0
    %230 = vmatprep.subr.bf16.mxu0 0
    %231 = vmatpush1.bf16.xpose.msra.mxu0 %v207
    %232 = vmatprep.subr.bf16.mxu0 0
    %233 = vmatpush1.bf16.xpose.msra.mxu0 %v210
    %234 = vmatprep.subr.bf16.mxu0 0
    %235 = vmatpush1.bf16.xpose.msra.mxu0 %v213
    %236 = vmatprep.subr.bf16.mxu0 0
    %237 = vmatpush1.bf16.xpose.msra.mxu0 %v216
    %238 = vmatprep.subr.bf16.mxu0 0
    %239 = vmatpush1.bf16.xpose.msra.mxu0 %v219
    %240 = vmatprep.subr.bf16.mxu0 0
    %241 = vmatpush1.bf16.xpose.msra.mxu0 %v222
    %242 = vmatprep.subr.bf16.mxu0 0
    %243 = vmatpush1.bf16.xpose.msra.mxu0 %v225
    %244 = vmatprep.subr.bf16.mxu0 0
    %245 = vmatpush1.bf16.xpose.msra.mxu0 %v228
    %246 = vmatprep.subr.bf16.mxu0 0
    %247 = vmatpush1.bf16.xpose.msra.mxu0 0
    %248 = vmatprep.subr.bf16.mxu0 0
    %249 = vmatpush1.bf16.xpose.msra.mxu0 0
    %250 = vmatprep.subr.bf16.mxu0 0
    %251 = vmatpush1.bf16.xpose.msra.mxu0 0
    %252 = vmatprep.subr.bf16.mxu0 0
    %253 = vmatpush1.bf16.xpose.msra.mxu0 0
    %254 = vmatprep.subr.bf16.mxu0 0
    %255 = vmatpush1.bf16.xpose.msra.mxu0 0
    %256 = vmatprep.subr.bf16.mxu0 0
    %257 = vmatpush1.bf16.xpose.msra.mxu0 0
    %258 = vmatprep.subr.bf16.mxu0 0
    %259 = vmatpush1.bf16.xpose.msra.mxu0 0
    %260 = vmatprep.subr.bf16.mxu0 0
    %261 = vmatpush1.bf16.xpose.msra.mxu0 0
    %262 = vmatprep.mubr.bf16.mxu0 0
    %263 = vmatmul.mubr.bf16.gmra.mrb[0].mxu0 %v204
    %v264 = vpop.f32.mrb[0].mxu0
    %v265 = vadd.f32 0.0, %v264
    %v266 = vpop.f32.mrb[0].mxu0
    %v267 = vpop.f32.mrb[0].mxu0
    %v268 = vpop.f32.mrb[0].mxu0
    %269 = vdwg.mxu0
    %v286 = vunpack.c.l.b16 %v131
    %v287 = vunpack.c.l.b16 %v132
    %v288 = vunpack.c.l.b16 %v133
    %v289 = vunpack.c.l.b16 %v134
    %v290 = vunpack.c.l.b16 %v135
    %v291 = vunpack.c.l.b16 %v136
    %v292 = vunpack.c.l.b16 %v137
    %v293 = vunpack.c.l.b16 %v138
    %v294 = vunpack.c.l.b16 %v139
    %v295 = vunpack.c.l.b16 %v140
    %v296 = vunpack.c.l.b16 %v141
    %v297 = vunpack.c.l.b16 %v142
    %v298 = vunpack.c.l.b16 %v143
    %v299 = vunpack.c.l.b16 %v144
    %v300 = vunpack.c.l.b16 %v145
    %v301 = vunpack.c.l.b16 %v146
    %v302 = vpack.c.b16 %v287, %v286
    %v303 = vpack.c.b16 %v289, %v288
    %v304 = vpack.c.b16 %v291, %v290
    %v305 = vpack.c.b16 %v293, %v292
    %v306 = vpack.c.b16 %v295, %v294
    %v307 = vpack.c.b16 %v297, %v296
    %v308 = vpack.c.b16 %v299, %v298
    %v309 = vpack.c.b16 %v301, %v300
    %vm310 = vcmask 523264
    %v312 = vsel %vm310, %v130, 0
    %v315 = vsel %vm310, %v302, 0
    %v318 = vsel %vm310, %v303, 0
    %v321 = vsel %vm310, %v304, 0
    %v324 = vsel %vm310, %v305, 0
    %v327 = vsel %vm310, %v306, 0
    %v330 = vsel %vm310, %v307, 0
    %v333 = vsel %vm310, %v308, 0
    %v336 = vsel %vm310, %v309, 0
    %338 = vmatprep.subr.bf16.mxu0 0
    %339 = vmatpush1.bf16.xpose.msra.mxu0 %v315
    %340 = vmatprep.subr.bf16.mxu0 0
    %341 = vmatpush1.bf16.xpose.msra.mxu0 %v318
    %342 = vmatprep.subr.bf16.mxu0 0
    %343 = vmatpush1.bf16.xpose.msra.mxu0 %v321
    %344 = vmatprep.subr.bf16.mxu0 0
    %345 = vmatpush1.bf16.xpose.msra.mxu0 %v324
    %346 = vmatprep.subr.bf16.mxu0 0
    %347 = vmatpush1.bf16.xpose.msra.mxu0 %v327
    %348 = vmatprep.subr.bf16.mxu0 0
    %349 = vmatpush1.bf16.xpose.msra.mxu0 %v330
    %350 = vmatprep.subr.bf16.mxu0 0
    %351 = vmatpush1.bf16.xpose.msra.mxu0 %v333
    %352 = vmatprep.subr.bf16.mxu0 0
    %353 = vmatpush1.bf16.xpose.msra.mxu0 %v336
    %354 = vmatprep.subr.bf16.mxu0 0
    %355 = vmatpush1.bf16.xpose.msra.mxu0 0
    %356 = vmatprep.subr.bf16.mxu0 0
    %357 = vmatpush1.bf16.xpose.msra.mxu0 0
    %358 = vmatprep.subr.bf16.mxu0 0
    %359 = vmatpush1.bf16.xpose.msra.mxu0 0
    %360 = vmatprep.subr.bf16.mxu0 0
    %361 = vmatpush1.bf16.xpose.msra.mxu0 0
    %362 = vmatprep.subr.bf16.mxu0 0
    %363 = vmatpush1.bf16.xpose.msra.mxu0 0
    %364 = vmatprep.subr.bf16.mxu0 0
    %365 = vmatpush1.bf16.xpose.msra.mxu0 0
    %366 = vmatprep.subr.bf16.mxu0 0
    %367 = vmatpush1.bf16.xpose.msra.mxu0 0
    %368 = vmatprep.subr.bf16.mxu0 0
    %369 = vmatpush1.bf16.xpose.msra.mxu0 0
    %370 = vmatprep.mubr.bf16.mxu0 0
    %371 = vmatmul.mubr.bf16.gmra.mrb[0].mxu0 %v312
    %v372 = vpop.f32.mrb[0].mxu0
    %v373 = vadd.f32 %v265, %v372
    %v374 = vpop.f32.mrb[0].mxu0
    %v375 = vpop.f32.mrb[0].mxu0
    %v376 = vpop.f32.mrb[0].mxu0
    %377 = vdwg.mxu0
    %v378 = vld [vmem:[%s6] sm:$0x1]
    %v380 = vlaneseq
    %v381 = vshrl.u32 %v380, 7
    %v382 = vsub.s32 0, %v381
    %v383 = vrot.slane %v378, %v382
    %v385 = vadd.f32 %v373, %v383
    %v386 = vmax.f32 %v385, 0.0
    %v387 = vpack.c.bf16 %v386, %v386
    %v388 = vld [vmem:[%s7] sm:$0xf]
    %v389 = vld [vmem:[%s8] sm:$0x1]
    %v391 = vlaneseq
    %v392 = vshrl.u32 %v391, 7
    %v393 = vsub.s32 0, %v392
    %v394 = vrot.slane %v389, %v393
    %396 = vmatprep.subr.bf16.mxu0 0
    %397 = vmatpush1.bf16.xpose.msra.mxu0 %v388
    %398 = vmatprep.subr.bf16.mxu0 0
    %399 = vmatpush1.bf16.xpose.msra.mxu0 0
    %400 = vmatprep.subr.bf16.mxu0 0
    %401 = vmatpush1.bf16.xpose.msra.mxu0 0
    %402 = vmatprep.subr.bf16.mxu0 0
    %403 = vmatpush1.bf16.xpose.msra.mxu0 0
    %404 = vmatprep.subr.bf16.mxu0 0
    %405 = vmatpush1.bf16.xpose.msra.mxu0 0
    %406 = vmatprep.subr.bf16.mxu0 0
    %407 = vmatpush1.bf16.xpose.msra.mxu0 0
    %408 = vmatprep.subr.bf16.mxu0 0
    %409 = vmatpush1.bf16.xpose.msra.mxu0 0
    %410 = vmatprep.subr.bf16.mxu0 0
    %411 = vmatpush1.bf16.xpose.msra.mxu0 0
    %412 = vmatprep.subr.bf16.mxu0 0
    %413 = vmatpush1.bf16.xpose.msra.mxu0 0
    %414 = vmatprep.subr.bf16.mxu0 0
    %415 = vmatpush1.bf16.xpose.msra.mxu0 0
    %416 = vmatprep.subr.bf16.mxu0 0
    %417 = vmatpush1.bf16.xpose.msra.mxu0 0
    %418 = vmatprep.subr.bf16.mxu0 0
    %419 = vmatpush1.bf16.xpose.msra.mxu0 0
    %420 = vmatprep.subr.bf16.mxu0 0
    %421 = vmatpush1.bf16.xpose.msra.mxu0 0
    %422 = vmatprep.subr.bf16.mxu0 0
    %423 = vmatpush1.bf16.xpose.msra.mxu0 0
    %424 = vmatprep.subr.bf16.mxu0 0
    %425 = vmatpush1.bf16.xpose.msra.mxu0 0
    %426 = vmatprep.subr.bf16.mxu0 0
    %427 = vmatpush1.bf16.xpose.msra.mxu0 0
    %428 = vmatprep.mubr.bf16.mxu0 0
    %429 = vmatmul.mubr.bf16.gmra.mrb[0].mxu0 %v387
    %v430 = vpop.f32.mrb[0].mxu0
    %v431 = vadd.f32 %v394, %v430
    %v432 = vpop.f32.mrb[0].mxu0
    %v433 = vpop.f32.mrb[0].mxu0
    %v434 = vpop.f32.mrb[0].mxu0
    %435 = vdwg.mxu0
    %vm436 = vcmask 64512
    %437 = vst.msk [vmem:[#allocation2] sm:$0xff] %vm436, %v431
    // Predicated region
    $region38: #{tpu_custom_call.1} parent=1 // pred_check
      _
    $region39: #{tpu_custom_call.1} parent=1 // pred_check_branch
      %439 = sbr.rel (0) target = $region41
    $region40: #{tpu_custom_call.1} parent=1 // pred_region
      %s441 = ssub.s32 128, 128
      %442 = vsyncadd [#allocation3], %s441
      %s444 = sshll.u32 [#allocation2], 4
      %s445 = int_to_ptr.vmem [resolvable:$true] %s444
      %447 = dma.vmem_to_hbm [thread:$0]  %s445, 128, %s9, [#allocation3]
    $region41: #{tpu_custom_call.1} parent=1 // pred_fallthru
      _
    // Predicated region
    $region42: #{tpu_custom_call.1} parent=1 // pred_check
      _
    $region43: #{tpu_custom_call.1} parent=1 // pred_check_branch
      %449 = sbr.rel (0) target = $region45
    $region44: #{tpu_custom_call.1} parent=1 // pred_region
      %450 = dma.done [#allocation3], 128
    $region45: #{tpu_custom_call.1} parent=1 // pred_fallthru
      _
    %451 = vsyncpa [#allocation3], 1

</llo_original>
